<compile_context>
chip_gen: v7x
topology: tpu7x:2x2x1
jax: 0.10.0
libtpu: 0.0.40
codegen_flags: <defaults>
</compile_context>

<pallas_src>
import functools
import math

import jax
import jax.numpy as jnp
from jax.experimental import pallas as pl
from jax.experimental.pallas import tpu as pltpu


def _round_up(x, m):
    return (x + m - 1) // m * m


# ----------------------------- Pallas kernel -------------------------------
def cnn_kernel(x_ref, w_ref, mask_ref, wl_ref, bl_ref, drop_ref, o_ref,
               *, seq_len, apply_dropout):
    """Fused conv(3/4/5 via im2col) + ReLU + time-max-pool + linear (+dropout).

    x_ref    : (B_TILE, L_pad, KC_pad) bf16  im2col activations (+ ones column)
    w_ref    : (KC_pad, F_pad)         bf16  fused conv weights (+ bias row)
    mask_ref : (L_pad, F_pad)          f32   1.0 where time t is valid for the
                                             feature's kernel width, else 0.0
    wl_ref   : (F_pad, NC_pad)         bf16  padded linear weight
    bl_ref   : (1, NC_pad)             f32   padded linear bias
    drop_ref : (B_TILE, NC_pad)        f32   inverted-dropout scale (ones eval)
    o_ref    : (B_TILE, NC_pad)        f32   logits (lane-dense store)
    """
    bt = x_ref.shape[0]
    kc = x_ref.shape[2]
    f = w_ref.shape[1]
    rows = bt * seq_len

    # (B_TILE, L, KC) -> (B_TILE*L, KC): layout no-op, tall M for the MXU.
    x2d = x_ref[...].reshape(rows, kc)

    # One matmul performs all three convs over all 5 taps (im2col) AND adds the
    # conv bias (ones-channel x bias-row).  bf16 x bf16 -> f32 accumulation.
    acc = jnp.dot(x2d, w_ref[...], preferred_element_type=jnp.float32)

    # ReLU, zero the per-group invalid time tail, max-pool over time.
    # Post-ReLU values are >= 0, so masking invalid positions to 0 cannot win
    # the max over the valid window -> identical to MaxPool1d(L - k + 1).
    z = jnp.maximum(acc, 0.0).reshape(bt, seq_len, f) * mask_ref[...][None, :, :]
    pooled = jnp.max(z, axis=1)                         # (bt, F_pad) f32

    out = jnp.dot(pooled.astype(wl_ref.dtype), wl_ref[...],
                  preferred_element_type=jnp.float32) + bl_ref[...]

    if apply_dropout:
        # PyTorch applies Dropout AFTER linear_1; the inverted-dropout scale is
        # precomputed host-side with jax.random so the kernel stays portable.
        out = out * drop_ref[...]

    o_ref[...] = out


# ------------------------------- wrapper ------------------------------------
def cnn_forward(x, lengths, params, *, is_train=True, dropout_rate=0.5, rng=None):
    """Matches CNN.forward(x, lengths, is_train).

    `x` is (B, L, C) = what the PyTorch forward receives before its internal
    transpose(1, 2).  `lengths` is unused, exactly as in the PyTorch module.
    """
    del lengths
    B, L, C = x.shape
    Fm = params["w3"].shape[2]
    n_classes = params["wl"].shape[1]
    K = 5                                        # widest filter
    if L < K:
        raise ValueError(f"seq_length={L} must be >= widest filter width {K}")

    f32, bf16 = jnp.float32, jnp.bfloat16

    # ---- lane/sublane-dense padded sizes ------------------------------------
    KC = K * C + 1                               # +1 = ones-channel for bias
    KC_pad = _round_up(KC, 128)
    F_pad = _round_up(3 * Fm, 128)
    NC_pad = _round_up(n_classes, 128)
    L_pad = _round_up(L, 8)

    # ---- batch tiling: >=2 grid steps when possible, VMEM-budgeted ----------
    B8 = _round_up(B, 8)
    if B8 >= 16:
        B_TILE = min(128, _round_up((B8 + 1) // 2, 8))   # megacore / pipelining
    else:
        B_TILE = B8

    def tile_vmem_bytes(bt):
        x_blk = bt * L_pad * KC_pad * 2           # bf16 activation block
        conv = bt * L_pad * F_pad * 4             # f32 conv intermediate
        weights = (KC_pad * F_pad * 2 + L_pad * F_pad * 4
                   + F_pad * NC_pad * 2 + NC_pad * 4)
        io = bt * NC_pad * 4 * 2                  # dropout scale + output
        return 2 * x_blk + 2 * conv + 2 * weights + io   # double-buffer headroom

    VMEM_BUDGET = 12 << 20        # conservative for v5e's 16 MiB scoped default
    while B_TILE > 8 and tile_vmem_bytes(B_TILE) > VMEM_BUDGET:
        B_TILE = _round_up(B_TILE // 2, 8)

    B_pad = _round_up(B8, B_TILE)
    grid = (B_pad // B_TILE,)

    # ---- fuse the three convs + bias into one im2col weight matrix ----------
    # Row block j*C:(j+1)*C holds tap j; row K*C is the ones-channel bias row.
    # Taps j >= k for a width-k group are simply zero rows (no wasted matmuls:
    # the contraction is one padded 128-lane axis either way).
    w_all = jnp.zeros((KC_pad, F_pad), f32)
    w_all = w_all.at[0:3 * C, 0 * Fm:1 * Fm].set(
        params["w3"].astype(f32).reshape(3 * C, Fm))
    w_all = w_all.at[0:4 * C, 1 * Fm:2 * Fm].set(
        params["w4"].astype(f32).reshape(4 * C, Fm))
    w_all = w_all.at[0:5 * C, 2 * Fm:3 * Fm].set(
        params["w5"].astype(f32).reshape(5 * C, Fm))
    w_all = w_all.at[K * C, 0 * Fm:1 * Fm].set(params["b3"].astype(f32)[0])
    w_all = w_all.at[K * C, 1 * Fm:2 * Fm].set(params["b4"].astype(f32)[0])
    w_all = w_all.at[K * C, 2 * Fm:3 * Fm].set(params["b5"].astype(f32)[0])
    w_all = w_all.astype(bf16)

    wl_p = jnp.zeros((F_pad, NC_pad), f32).at[:3 * Fm, :n_classes].set(
        params["wl"].astype(f32)).astype(bf16)
    bl_p = jnp.zeros((1, NC_pad), f32).at[:, :n_classes].set(
        params["bl"].astype(f32))

    # valid-time mask: time t is valid for a width-k feature iff t <= L - k.
    # Padded feature columns are all-zero -> their mask value is irrelevant.
    kf = jnp.full((F_pad,), K, jnp.int32)
    kf = (kf.at[0 * Fm:1 * Fm].set(3)
            .at[1 * Fm:2 * Fm].set(4)
            .at[2 * Fm:3 * Fm].set(5))
    mask = (jnp.arange(L_pad)[:, None] <= (L - kf)[None, :]).astype(f32)

    # ---- im2col activations (+ ones channel), zero-padded, cast to bf16 -----
    xc = x.astype(f32)
    shifts = []
    for j in range(K):
        sj = jnp.zeros((B, L_pad, C), f32)
        sj = sj.at[:, :L - j, :].set(xc[:, j:, :])
        shifts.append(sj)
    x_im2col = jnp.concatenate(shifts, axis=-1)          # (B, L_pad, K*C)

    x_p = jnp.zeros((B_pad, L_pad, KC_pad), bf16)
    x_p = x_p.at[:B, :, :K * C].set(x_im2col.astype(bf16))
    x_p = x_p.at[:, :, K * C].set(jnp.asarray(1.0, bf16))   # bias ones-channel

    # ---- dropout scale (host-side jax.random; inverted dropout) -------------
    apply_dropout = bool(is_train) and float(dropout_rate) > 0.0
    keep_prob = 1.0 - float(dropout_rate)
    if apply_dropout:
        if rng is None:
            raise ValueError("rng key required when is_train=True and "
                             "dropout_rate > 0")
        keep = jax.random.bernoulli(rng, keep_prob, (B_pad, NC_pad))
        drop_scale = keep.astype(f32) / keep_prob
        # TODO(synk): dropout mask uses jax.random, not torch's RNG stream.
    else:
        drop_scale = jnp.ones((B_pad, NC_pad), f32)

    kernel = functools.partial(cnn_kernel, seq_len=L_pad,
                               apply_dropout=apply_dropout)

    flops = 2 * B_pad * L_pad * KC_pad * F_pad + 2 * B_pad * F_pad * NC_pad
    bytes_accessed = (x_p.size * 2 + w_all.size * 2 + mask.size * 4
                      + wl_p.size * 2 + bl_p.size * 4
                      + drop_scale.size * 4 + B_pad * NC_pad * 4)
    cost = pl.CostEstimate(flops=flops, transcendentals=0,
                           bytes_accessed=bytes_accessed)

    out_p = pl.pallas_call(
        kernel,
        out_shape=jax.ShapeDtypeStruct((B_pad, NC_pad), f32),
        grid=grid,
        in_specs=[
            pl.BlockSpec((B_TILE, L_pad, KC_pad), lambda i: (i, 0, 0)),  # x
            pl.BlockSpec((KC_pad, F_pad), lambda i: (0, 0)),             # W_all
            pl.BlockSpec((L_pad, F_pad), lambda i: (0, 0)),              # mask
            pl.BlockSpec((F_pad, NC_pad), lambda i: (0, 0)),             # wl
            pl.BlockSpec((1, NC_pad), lambda i: (0, 0)),                 # bl
            pl.BlockSpec((B_TILE, NC_pad), lambda i: (i, 0)),            # drop
        ],
        out_specs=pl.BlockSpec((B_TILE, NC_pad), lambda i: (i, 0)),
        compiler_params=pltpu.CompilerParams(
            dimension_semantics=("parallel",),
            vmem_limit_bytes=32 << 20),
        cost_estimate=cost,
    )(x_p, w_all, mask, wl_p, bl_p, drop_scale)

    return out_p[:B, :n_classes]


# --------------------------- deterministic params ---------------------------
def init_params(key, C, Fm, n_classes):
    """PyTorch-style uniform(-1/sqrt(fan_in), 1/sqrt(fan_in)) init.
    Conv weights stored as (k, C, F) (PyTorch Conv1d weight is (F, C, k));
    linear weight stored as (3F, n_classes) (PyTorch is (n_classes, 3F))."""
    ks = jax.random.split(key, 8)

    def u(k, shape, fan_in):
        b = 1.0 / math.sqrt(fan_in)
        return jax.random.uniform(k, shape, jnp.float32, -b, b)

    return dict(
        w3=u(ks[0], (3, C, Fm), C * 3), b3=u(ks[1], (1, Fm), C * 3),
        w4=u(ks[2], (4, C, Fm), C * 4), b4=u(ks[3], (1, Fm), C * 4),
        w5=u(ks[4], (5, C, Fm), C * 5), b5=u(ks[5], (1, Fm), C * 5),
        wl=u(ks[6], (3 * Fm, n_classes), 3 * Fm),
        bl=u(ks[7], (1, n_classes), 3 * Fm),
    )


# ------------------------------ pure-JAX reference ---------------------------
def ref_forward(x, params, compute_dtype=jnp.float32):
    """Pure-JAX reference.  With compute_dtype=bfloat16 it replicates the
    kernel's cast-to-bf16 / accumulate-in-f32 scheme exactly."""
    B, L, C = x.shape
    cd = compute_dtype
    xc = x.astype(cd)

    def conv_relu_pool(w, b):             # w: (k, C, F), b: (1, F)
        k = w.shape[0]
        L_out = L - k + 1
        acc = sum(jnp.einsum("blc,cf->blf", xc[:, j:j + L_out, :],
                             w[j].astype(cd),
                             preferred_element_type=jnp.float32)
                  for j in range(k))
        acc = acc + b.astype(cd).astype(jnp.float32)[None, :, :]
        return jnp.max(jax.nn.relu(acc), axis=1)

    pen = jnp.concatenate([conv_relu_pool(params["w3"], params["b3"]),
                           conv_relu_pool(params["w4"], params["b4"]),
                           conv_relu_pool(params["w5"], params["b5"])], axis=1)
    out = jnp.einsum("bf,fc->bc", pen.astype(cd), params["wl"].astype(cd),
                     preferred_element_type=jnp.float32)
    return out + params["bl"].astype(jnp.float32)


# ---------------------------------- main -------------------------------------
if __name__ == "__main__":
    B, L, C = 2, 16, 4          # batch, seq_length, n_channels (embedding dim)
    Fm, n_classes = 8, 4        # n_featuremaps, n_classes
    dropout = 0.5

    key = jax.random.PRNGKey(0)
    kx, kp, kd = jax.random.split(key, 3)
    x = jax.random.normal(kx, (B, L, C), jnp.float32)
    lengths = jnp.full((B,), L, jnp.int32)   # unused, kept for signature parity
    params = init_params(kp, C, Fm, n_classes)

    # Forward with fused dropout (is_train=True, matches PyTorch default path)
    out = cnn_forward(x, lengths, params, is_train=True,
                      dropout_rate=dropout, rng=kd)
    jax.block_until_ready(out)
    assert out.shape == (B, n_classes)

    # Numerical check of the deterministic path vs a reference using the same
    # bf16-input / f32-accumulation scheme as the kernel.
    pre = cnn_forward(x, lengths, params, is_train=False)
    jax.block_until_ready(pre)
    ref = ref_forward(x, params, compute_dtype=jnp.bfloat16)
    assert jnp.allclose(pre, ref, atol=2e-3, rtol=2e-3), "mismatch vs reference"

    print("KERNEL_OK")
</pallas_src>

<mosaic_0001>
module attributes {stable_mosaic.version = 11 : i64} {
  func.func @cnn_kernel(%arg0: i32, %arg1: memref<8x16x128xbf16, #tpu.memory_space<vmem>>, %arg2: memref<128x128xbf16, #tpu.memory_space<vmem>>, %arg3: memref<16x128xf32, #tpu.memory_space<vmem>>, %arg4: memref<128x128xbf16, #tpu.memory_space<vmem>>, %arg5: memref<1x128xf32, #tpu.memory_space<vmem>>, %arg6: memref<8x128xf32, #tpu.memory_space<vmem>>, %arg7: memref<8x128xf32, #tpu.memory_space<vmem>>) attributes {dimension_semantics = [#tpu.dimension_semantics<parallel>], iteration_bounds = array<i64: 1>, scalar_prefetch = 0 : i64, scratch_operands = 0 : i64, tpu.core_type = #tpu.core_type<tc>, window_params = [{transform_indices = @transform_0, window_bounds = array<i64: 8, 16, 128>}, {pipeline_mode = #tpu.pipeline_mode<synchronous>, transform_indices = @transform_1, window_bounds = array<i64: 128, 128>}, {pipeline_mode = #tpu.pipeline_mode<synchronous>, transform_indices = @transform_2, window_bounds = array<i64: 16, 128>}, {pipeline_mode = #tpu.pipeline_mode<synchronous>, transform_indices = @transform_3, window_bounds = array<i64: 128, 128>}, {pipeline_mode = #tpu.pipeline_mode<synchronous>, transform_indices = @transform_4, window_bounds = array<i64: 1, 128>}, {transform_indices = @transform_5, window_bounds = array<i64: 8, 128>}, {transform_indices = @transform_6, window_bounds = array<i64: 8, 128>}]} {
    %c0 = arith.constant 0 : index
    %c0_0 = arith.constant 0 : index
    %c0_1 = arith.constant 0 : index
    %0 = vector.load %arg1[%c0, %c0_0, %c0_1] : memref<8x16x128xbf16, #tpu.memory_space<vmem>>, vector<8x16x128xbf16>
    %1 = vector.shape_cast %0 : vector<8x16x128xbf16> to vector<128x128xbf16>
    %c0_2 = arith.constant 0 : index
    %c0_3 = arith.constant 0 : index
    %2 = vector.load %arg2[%c0_2, %c0_3] : memref<128x128xbf16, #tpu.memory_space<vmem>>, vector<128x128xbf16>
    %cst = arith.constant dense<0.000000e+00> : vector<128x128xf32>
    %3 = tpu.matmul %1, %2, %cst {dimension_numbers = #tpu.dot_dimension_numbers<[1], [0], [0], [1], [0, 0, 1, 1], [], []>} : vector<128x128xbf16>, vector<128x128xbf16>, vector<128x128xf32> -> vector<128x128xf32>
    %cst_4 = arith.constant 0.000000e+00 : f32
    %4 = vector.broadcast %cst_4 : f32 to vector<128x128xf32>
    %5 = arith.maximumf %3, %4 : vector<128x128xf32>
    %6 = vector.shape_cast %5 : vector<128x128xf32> to vector<8x16x128xf32>
    %c0_5 = arith.constant 0 : index
    %c0_6 = arith.constant 0 : index
    %7 = vector.load %arg3[%c0_5, %c0_6] : memref<16x128xf32, #tpu.memory_space<vmem>>, vector<16x128xf32>
    %8 = vector.shape_cast %7 : vector<16x128xf32> to vector<1x16x128xf32>
    %9 = vector.broadcast %8 : vector<1x16x128xf32> to vector<8x16x128xf32>
    %10 = arith.mulf %6, %9 : vector<8x16x128xf32>
    %cst_7 = arith.constant dense<0xFF800000> : vector<8x128xf32>
    %11 = vector.multi_reduction <maximumf>, %10, %cst_7 [1] : vector<8x16x128xf32> to vector<8x128xf32>
    %12 = arith.truncf %11 : vector<8x128xf32> to vector<8x128xbf16>
    %c0_8 = arith.constant 0 : index
    %c0_9 = arith.constant 0 : index
    %13 = vector.load %arg4[%c0_8, %c0_9] : memref<128x128xbf16, #tpu.memory_space<vmem>>, vector<128x128xbf16>
    %cst_10 = arith.constant dense<0.000000e+00> : vector<8x128xf32>
    %14 = tpu.matmul %12, %13, %cst_10 {dimension_numbers = #tpu.dot_dimension_numbers<[1], [0], [0], [1], [0, 0, 1, 1], [], []>} : vector<8x128xbf16>, vector<128x128xbf16>, vector<8x128xf32> -> vector<8x128xf32>
    %c0_11 = arith.constant 0 : index
    %c0_12 = arith.constant 0 : index
    %15 = vector.load %arg5[%c0_11, %c0_12] : memref<1x128xf32, #tpu.memory_space<vmem>>, vector<1x128xf32>
    %16 = vector.broadcast %15 : vector<1x128xf32> to vector<8x128xf32>
    %17 = arith.addf %14, %16 : vector<8x128xf32>
    %c0_13 = arith.constant 0 : index
    %c0_14 = arith.constant 0 : index
    %18 = vector.load %arg6[%c0_13, %c0_14] : memref<8x128xf32, #tpu.memory_space<vmem>>, vector<8x128xf32>
    %19 = arith.mulf %17, %18 : vector<8x128xf32>
    %c0_15 = arith.constant 0 : index
    %c0_16 = arith.constant 0 : index
    %20 = vector.load %arg7[%c0_15, %c0_16] : memref<8x128xf32, #tpu.memory_space<vmem>>, vector<8x128xf32>
    tpu.vector_store %arg7[%c0_15, %c0_16], %19 {strides = array<i32>} : memref<8x128xf32, #tpu.memory_space<vmem>>, vector<8x128xf32>,
    return
  }
  func.func @transform_0(%arg0: i32) -> (i32, i32, i32) {
    %c0_i32 = arith.constant 0 : i32
    %c0_i32_0 = arith.constant 0 : i32
    %c0_i32_1 = arith.constant 0 : i32
    return %arg0, %c0_i32, %c0_i32_0 : i32, i32, i32
  }
  func.func @transform_1(%arg0: i32) -> (i32, i32) {
    %c0_i32 = arith.constant 0 : i32
    %c0_i32_0 = arith.constant 0 : i32
    %c0_i32_1 = arith.constant 0 : i32
    return %c0_i32, %c0_i32_0 : i32, i32
  }
  func.func @transform_2(%arg0: i32) -> (i32, i32) {
    %c0_i32 = arith.constant 0 : i32
    %c0_i32_0 = arith.constant 0 : i32
    %c0_i32_1 = arith.constant 0 : i32
    return %c0_i32, %c0_i32_0 : i32, i32
  }
  func.func @transform_3(%arg0: i32) -> (i32, i32) {
    %c0_i32 = arith.constant 0 : i32
    %c0_i32_0 = arith.constant 0 : i32
    %c0_i32_1 = arith.constant 0 : i32
    return %c0_i32, %c0_i32_0 : i32, i32
  }
  func.func @transform_4(%arg0: i32) -> (i32, i32) {
    %c0_i32 = arith.constant 0 : i32
    %c0_i32_0 = arith.constant 0 : i32
    %c0_i32_1 = arith.constant 0 : i32
    return %c0_i32, %c0_i32_0 : i32, i32
  }
  func.func @transform_5(%arg0: i32) -> (i32, i32) {
    %c0_i32 = arith.constant 0 : i32
    %c0_i32_0 = arith.constant 0 : i32
    return %arg0, %c0_i32 : i32, i32
  }
  func.func @transform_6(%arg0: i32) -> (i32, i32) {
    %c0_i32 = arith.constant 0 : i32
    %c0_i32_0 = arith.constant 0 : i32
    return %arg0, %c0_i32 : i32, i32
  }
}

</mosaic_0001>

<llo_original>
// kernel: tpu_custom_call.1
$region0: #{tpu_custom_call.1}
  #allocation0 [shape = 'u32[]', space=smem, size = 0x4, offset = 0x4, fixed_abs, tag = 'smem constant byte address 0x4 - core index']
  #allocation1 [shape = 'u32[144,128]{1,0:T(1,128)}', space=vmem, size = 0x12000, scoped, tag = 'internal scratch']
  %s0 = inlined_call_operand.hbm [shape: bf16[8,16,128], index: 0, kind: input, shape index: {}]
  %s1 = inlined_call_operand.hbm [shape: bf16[128,128], index: 1, kind: input, shape index: {}]
  %s2 = inlined_call_operand.hbm [shape: f32[16,128], index: 2, kind: input, shape index: {}]
  %s3 = inlined_call_operand.hbm [shape: bf16[128,128], index: 3, kind: input, shape index: {}]
  %s4 = inlined_call_operand.vmem [shape: f32[1,128], index: 4, kind: input, shape index: {}]
  %s5 = inlined_call_operand.vmem [shape: f32[8,128], index: 5, kind: input, shape index: {}]
  %s6 = inlined_call_operand.hbm [shape: f32[8,128], index: 6, kind: output, shape index: {}]
  %s7 = sld [smem:[#allocation0]]
  $region50: #{tpu_custom_call.1} parent=0
    _
  %s9 = ssub.s32 1, %s7
  %s10 = scalar_select 0, %s9, %s7
  $region1: #{tpu_custom_call.1} parent=0
    #allocation2 [shape = 'u8[32768]{0}', space=vmem, size = 0x8000, scoped, tag = 'input window, operand 0, single buffered']
    #allocation3 [shape = 's32[1]{0}', space=sflag, size = 0x4, scoped, tag = 'scoped memory for tpu_custom_call.1']
    #allocation4 [shape = 's32[1]{0}', space=sflag, size = 0x4, scoped, tag = 'scoped memory for tpu_custom_call.1']
    #allocation5 [shape = 'u8[32768]{0}', space=vmem, size = 0x8000, scoped, tag = 'input window, operand 1, single buffered']
    #allocation6 [shape = 's32[1]{0}', space=sflag, size = 0x4, scoped, tag = 'scoped memory for tpu_custom_call.1']
    #allocation7 [shape = 'u8[8192]{0}', space=vmem, size = 0x2000, scoped, tag = 'input window, operand 2, single buffered']
    #allocation8 [shape = 'u8[32768]{0}', space=vmem, size = 0x8000, scoped, tag = 'input window, operand 3, single buffered']
    #allocation9 [shape = 's32[1]{0}', space=sflag, size = 0x4, scoped, tag = 'scoped memory for tpu_custom_call.1']
    #allocation10 [shape = 'u8[4096]{0}', space=vmem, size = 0x1000, scoped, tag = 'output window, operand 0, single buffered']
    %11 = vsyncpa [#allocation3], 0
    %12 = vsyncpa [#allocation6], 0
    %13 = vsyncpa [#allocation9], 0
    %14 = vsyncpa [#allocation4], 0
    // Predicated region
    $region2: #{tpu_custom_call.1} parent=1 // pred_check
      _
    $region3: #{tpu_custom_call.1} parent=1 // pred_check_branch
      %16 = sbr.rel (0) target = $region5
    $region4: #{tpu_custom_call.1} parent=1 // pred_region
      %s18 = ssub.s32 1024, 1024
      %19 = vsyncadd [#allocation3], %s18
      %s20 = sshll.u32 [#allocation2], 4
      %s21 = int_to_ptr.vmem [resolvable:$true] %s20
      %26 = dma.hbm_to_vmem [thread:$0]  %s0, 1024, %s21, [#allocation3], 64, 64, 4
    $region5: #{tpu_custom_call.1} parent=1 // pred_fallthru
      _
    // Predicated region
    $region6: #{tpu_custom_call.1} parent=1 // pred_check
      _
    $region7: #{tpu_custom_call.1} parent=1 // pred_check_branch
      %28 = sbr.rel (0) target = $region9
    $region8: #{tpu_custom_call.1} parent=1 // pred_region
      %s30 = ssub.s32 1024, 1024
      %31 = vsyncadd [#allocation6], %s30
      %s32 = sshll.u32 [#allocation5], 4
      %s33 = int_to_ptr.vmem [resolvable:$true] %s32
      %38 = dma.hbm_to_vmem [thread:$0]  %s1, 1024, %s33, [#allocation6], 64, 64, 4
    $region9: #{tpu_custom_call.1} parent=1 // pred_fallthru
      _
    // Predicated region
    $region10: #{tpu_custom_call.1} parent=1 // pred_check
      _
    $region11: #{tpu_custom_call.1} parent=1 // pred_check_branch
      %40 = sbr.rel (0) target = $region13
    $region12: #{tpu_custom_call.1} parent=1 // pred_region
      %s42 = ssub.s32 256, 256
      %43 = vsyncadd [#allocation6], %s42
      %s44 = sshll.u32 [#allocation7], 4
      %s45 = int_to_ptr.vmem [resolvable:$true] %s44
      %50 = dma.hbm_to_vmem [thread:$0]  %s2, 256, %s45, [#allocation6], 128, 128, 8
    $region13: #{tpu_custom_call.1} parent=1 // pred_fallthru
      _
    // Predicated region
    $region14: #{tpu_custom_call.1} parent=1 // pred_check
      _
    $region15: #{tpu_custom_call.1} parent=1 // pred_check_branch
      %52 = sbr.rel (0) target = $region17
    $region16: #{tpu_custom_call.1} parent=1 // pred_region
      %s54 = ssub.s32 1024, 1024
      %55 = vsyncadd [#allocation9], %s54
      %s56 = sshll.u32 [#allocation8], 4
      %s57 = int_to_ptr.vmem [resolvable:$true] %s56
      %62 = dma.hbm_to_vmem [thread:$0]  %s3, 1024, %s57, [#allocation9], 64, 64, 4
    $region17: #{tpu_custom_call.1} parent=1 // pred_fallthru
      _
    // Predicated region
    $region18: #{tpu_custom_call.1} parent=1 // pred_check
      _
    $region19: #{tpu_custom_call.1} parent=1 // pred_check_branch
      %64 = sbr.rel (0) target = $region21
    $region20: #{tpu_custom_call.1} parent=1 // pred_region
      _
    $region21: #{tpu_custom_call.1} parent=1 // pred_fallthru
      _
    // Predicated region
    $region22: #{tpu_custom_call.1} parent=1 // pred_check
      _
    $region23: #{tpu_custom_call.1} parent=1 // pred_check_branch
      %66 = sbr.rel (0) target = $region25
    $region24: #{tpu_custom_call.1} parent=1 // pred_region
      _
    $region25: #{tpu_custom_call.1} parent=1 // pred_fallthru
      _
    // Predicated region
    $region26: #{tpu_custom_call.1} parent=1 // pred_check
      _
    $region27: #{tpu_custom_call.1} parent=1 // pred_check_branch
      %68 = sbr.rel (0) target = $region29
    $region28: #{tpu_custom_call.1} parent=1 // pred_region
      %69 = dma.done [#allocation3], 1024
    $region29: #{tpu_custom_call.1} parent=1 // pred_fallthru
      _
    // Predicated region
    $region30: #{tpu_custom_call.1} parent=1 // pred_check
      _
    $region31: #{tpu_custom_call.1} parent=1 // pred_check_branch
      %71 = sbr.rel (0) target = $region33
    $region32: #{tpu_custom_call.1} parent=1 // pred_region
      %72 = dma.done [#allocation6], 1024
    $region33: #{tpu_custom_call.1} parent=1 // pred_fallthru
      _
    // Predicated region
    $region34: #{tpu_custom_call.1} parent=1 // pred_check
      _
    $region35: #{tpu_custom_call.1} parent=1 // pred_check_branch
      %74 = sbr.rel (0) target = $region37
    $region36: #{tpu_custom_call.1} parent=1 // pred_region
      %75 = dma.done [#allocation6], 256
    $region37: #{tpu_custom_call.1} parent=1 // pred_fallthru
      _
    // Predicated region
    $region38: #{tpu_custom_call.1} parent=1 // pred_check
      _
    $region39: #{tpu_custom_call.1} parent=1 // pred_check_branch
      %77 = sbr.rel (0) target = $region41
    $region40: #{tpu_custom_call.1} parent=1 // pred_region
      %78 = dma.done [#allocation9], 1024
    $region41: #{tpu_custom_call.1} parent=1 // pred_fallthru
      _
    %v80 = vld [vmem:[#allocation2] sm:$0xf]
    %v81 = vld [vmem:[#allocation2 + $0x4] sm:$0xf]
    %v82 = vld [vmem:[#allocation2 + $0x8] sm:$0xf]
    %v83 = vld [vmem:[#allocation2 + $0xc] sm:$0xf]
    %v84 = vld [vmem:[#allocation2 + $0x10] sm:$0xf]
    %v85 = vld [vmem:[#allocation2 + $0x14] sm:$0xf]
    %v86 = vld [vmem:[#allocation2 + $0x18] sm:$0xf]
    %v87 = vld [vmem:[#allocation2 + $0x1c] sm:$0xf]
    %v88 = vld [vmem:[#allocation2 + $0x20] sm:$0xf]
    %v89 = vld [vmem:[#allocation2 + $0x24] sm:$0xf]
    %v90 = vld [vmem:[#allocation2 + $0x28] sm:$0xf]
    %v91 = vld [vmem:[#allocation2 + $0x2c] sm:$0xf]
    %v92 = vld [vmem:[#allocation2 + $0x30] sm:$0xf]
    %v93 = vld [vmem:[#allocation2 + $0x34] sm:$0xf]
    %v94 = vld [vmem:[#allocation2 + $0x38] sm:$0xf]
    %v95 = vld [vmem:[#allocation2 + $0x3c] sm:$0xf]
    %v96 = vld [vmem:[#allocation5] sm:$0xf]
    %v97 = vld [vmem:[#allocation5 + $0x4] sm:$0xf]
    %v98 = vld [vmem:[#allocation5 + $0x8] sm:$0xf]
    %v99 = vld [vmem:[#allocation5 + $0xc] sm:$0xf]
    %v100 = vld [vmem:[#allocation5 + $0x10] sm:$0xf]
    %v101 = vld [vmem:[#allocation5 + $0x14] sm:$0xf]
    %v102 = vld [vmem:[#allocation5 + $0x18] sm:$0xf]
    %v103 = vld [vmem:[#allocation5 + $0x1c] sm:$0xf]
    %v104 = vld [vmem:[#allocation5 + $0x20] sm:$0xf]
    %v105 = vld [vmem:[#allocation5 + $0x24] sm:$0xf]
    %v106 = vld [vmem:[#allocation5 + $0x28] sm:$0xf]
    %v107 = vld [vmem:[#allocation5 + $0x2c] sm:$0xf]
    %v108 = vld [vmem:[#allocation5 + $0x30] sm:$0xf]
    %v109 = vld [vmem:[#allocation5 + $0x34] sm:$0xf]
    %v110 = vld [vmem:[#allocation5 + $0x38] sm:$0xf]
    %v111 = vld [vmem:[#allocation5 + $0x3c] sm:$0xf]
    %v128 = vunpack.c.l.b16 %v80
    %v129 = vunpack.c.l.b16 %v81
    %v130 = vunpack.c.l.b16 %v82
    %v131 = vunpack.c.l.b16 %v83
    %v132 = vunpack.c.l.b16 %v84
    %v133 = vunpack.c.l.b16 %v85
    %v134 = vunpack.c.l.b16 %v86
    %v135 = vunpack.c.l.b16 %v87
    %v136 = vunpack.c.l.b16 %v88
    %v137 = vunpack.c.l.b16 %v89
    %v138 = vunpack.c.l.b16 %v90
    %v139 = vunpack.c.l.b16 %v91
    %v140 = vunpack.c.l.b16 %v92
    %v141 = vunpack.c.l.b16 %v93
    %v142 = vunpack.c.l.b16 %v94
    %v143 = vunpack.c.l.b16 %v95
    %v144 = vpack.c.b16 %v129, %v128
    %v145 = vpack.c.b16 %v131, %v130
    %v146 = vpack.c.b16 %v133, %v132
    %v147 = vpack.c.b16 %v135, %v134
    %v148 = vpack.c.b16 %v137, %v136
    %v149 = vpack.c.b16 %v139, %v138
    %v150 = vpack.c.b16 %v141, %v140
    %v151 = vpack.c.b16 %v143, %v142
    %v176 = vunpack.c.l.b16 %v96
    %v177 = vunpack.c.l.b16 %v97
    %v178 = vunpack.c.l.b16 %v98
    %v179 = vunpack.c.l.b16 %v99
    %v180 = vunpack.c.l.b16 %v100
    %v181 = vunpack.c.l.b16 %v101
    %v182 = vunpack.c.l.b16 %v102
    %v183 = vunpack.c.l.b16 %v103
    %v184 = vunpack.c.l.b16 %v104
    %v185 = vunpack.c.l.b16 %v105
    %v186 = vunpack.c.l.b16 %v106
    %v187 = vunpack.c.l.b16 %v107
    %v188 = vunpack.c.l.b16 %v108
    %v189 = vunpack.c.l.b16 %v109
    %v190 = vunpack.c.l.b16 %v110
    %v191 = vunpack.c.l.b16 %v111
    %v192 = vpack.c.b16 %v177, %v176
    %v193 = vpack.c.b16 %v179, %v178
    %v194 = vpack.c.b16 %v181, %v180
    %v195 = vpack.c.b16 %v183, %v182
    %v196 = vpack.c.b16 %v185, %v184
    %v197 = vpack.c.b16 %v187, %v186
    %v198 = vpack.c.b16 %v189, %v188
    %v199 = vpack.c.b16 %v191, %v190
    %208 = vmatprep.subr.bf16.mxu0 0
    %209 = vmatpush1.bf16.msra.mxu0 %v192
    %210 = vmatprep.subr.bf16.mxu0 0
    %211 = vmatpush1.bf16.msra.mxu0 %v193
    %212 = vmatprep.subr.bf16.mxu0 0
    %213 = vmatpush1.bf16.msra.mxu0 %v194
    %214 = vmatprep.subr.bf16.mxu0 0
    %215 = vmatpush1.bf16.msra.mxu0 %v195
    %216 = vmatprep.subr.bf16.mxu0 0
    %217 = vmatpush1.bf16.msra.mxu0 %v196
    %218 = vmatprep.subr.bf16.mxu0 0
    %219 = vmatpush1.bf16.msra.mxu0 %v197
    %220 = vmatprep.subr.bf16.mxu0 0
    %221 = vmatpush1.bf16.msra.mxu0 %v198
    %222 = vmatprep.subr.bf16.mxu0 0
    %223 = vmatpush1.bf16.msra.mxu0 %v199
    %224 = vmatprep.subr.bf16.mxu0 0
    %225 = vmatpush1.bf16.msra.mxu0 0
    %226 = vmatprep.subr.bf16.mxu0 0
    %227 = vmatpush1.bf16.msra.mxu0 0
    %228 = vmatprep.subr.bf16.mxu0 0
    %229 = vmatpush1.bf16.msra.mxu0 0
    %230 = vmatprep.subr.bf16.mxu0 0
    %231 = vmatpush1.bf16.msra.mxu0 0
    %232 = vmatprep.subr.bf16.mxu0 0
    %233 = vmatpush1.bf16.msra.mxu0 0
    %234 = vmatprep.subr.bf16.mxu0 0
    %235 = vmatpush1.bf16.msra.mxu0 0
    %236 = vmatprep.subr.bf16.mxu0 0
    %237 = vmatpush1.bf16.msra.mxu0 0
    %238 = vmatprep.subr.bf16.mxu0 0
    %239 = vmatpush1.bf16.msra.mxu0 0
    %240 = vmatprep.mubr.bf16.mxu0 0
    %241 = vmatmul.mubr.bf16.gmra.mrb[0].mxu0 %v144
    %v242 = vpop.f32.mrb[0].mxu0
    %v243 = vadd.f32 0.0, %v242
    %v244 = vpop.f32.mrb[0].mxu0
    %v245 = vpop.f32.mrb[0].mxu0
    %v246 = vadd.f32 0.0, %v245
    %v247 = vpop.f32.mrb[0].mxu0
    %248 = vmatprep.mubr.bf16.mxu0 0
    %249 = vmatmul.mubr.bf16.gmra.mrb[0].mxu0 %v145
    %v250 = vpop.f32.mrb[0].mxu0
    %v251 = vadd.f32 0.0, %v250
    %v252 = vpop.f32.mrb[0].mxu0
    %v253 = vpop.f32.mrb[0].mxu0
    %v254 = vadd.f32 0.0, %v253
    %v255 = vpop.f32.mrb[0].mxu0
    %256 = vmatprep.mubr.bf16.mxu0 0
    %257 = vmatmul.mubr.bf16.gmra.mrb[0].mxu0 %v146
    %v258 = vpop.f32.mrb[0].mxu0
    %v259 = vadd.f32 0.0, %v258
    %v260 = vpop.f32.mrb[0].mxu0
    %v261 = vpop.f32.mrb[0].mxu0
    %v262 = vadd.f32 0.0, %v261
    %v263 = vpop.f32.mrb[0].mxu0
    %264 = vmatprep.mubr.bf16.mxu0 0
    %265 = vmatmul.mubr.bf16.gmra.mrb[0].mxu0 %v147
    %v266 = vpop.f32.mrb[0].mxu0
    %v267 = vadd.f32 0.0, %v266
    %v268 = vpop.f32.mrb[0].mxu0
    %v269 = vpop.f32.mrb[0].mxu0
    %v270 = vadd.f32 0.0, %v269
    %v271 = vpop.f32.mrb[0].mxu0
    %272 = vmatprep.mubr.bf16.mxu0 0
    %273 = vmatmul.mubr.bf16.gmra.mrb[0].mxu0 %v148
    %v274 = vpop.f32.mrb[0].mxu0
    %v275 = vadd.f32 0.0, %v274
    %v276 = vpop.f32.mrb[0].mxu0
    %v277 = vpop.f32.mrb[0].mxu0
    %v278 = vadd.f32 0.0, %v277
    %v279 = vpop.f32.mrb[0].mxu0
    %280 = vmatprep.mubr.bf16.mxu0 0
    %281 = vmatmul.mubr.bf16.gmra.mrb[0].mxu0 %v149
    %v282 = vpop.f32.mrb[0].mxu0
    %v283 = vadd.f32 0.0, %v282
    %v284 = vpop.f32.mrb[0].mxu0
    %v285 = vpop.f32.mrb[0].mxu0
    %v286 = vadd.f32 0.0, %v285
    %v287 = vpop.f32.mrb[0].mxu0
    %288 = vmatprep.mubr.bf16.mxu0 0
    %289 = vmatmul.mubr.bf16.gmra.mrb[0].mxu0 %v150
    %v290 = vpop.f32.mrb[0].mxu0
    %v291 = vadd.f32 0.0, %v290
    %v292 = vpop.f32.mrb[0].mxu0
    %v293 = vpop.f32.mrb[0].mxu0
    %v294 = vadd.f32 0.0, %v293
    %v295 = vpop.f32.mrb[0].mxu0
    %296 = vmatprep.mubr.bf16.mxu0 0
    %297 = vmatmul.mubr.bf16.gmra.mrb[0].mxu0 %v151
    %v298 = vpop.f32.mrb[0].mxu0
    %v299 = vadd.f32 0.0, %v298
    %v300 = vpop.f32.mrb[0].mxu0
    %v301 = vpop.f32.mrb[0].mxu0
    %v302 = vadd.f32 0.0, %v301
    %v303 = vpop.f32.mrb[0].mxu0
    %304 = vdwg.mxu0
    %v305 = vmax.f32 %v243, 0.0
    %v306 = vmax.f32 %v246, 0.0
    %v307 = vmax.f32 %v251, 0.0
    %v308 = vmax.f32 %v254, 0.0
    %v309 = vmax.f32 %v259, 0.0
    %v310 = vmax.f32 %v262, 0.0
    %v311 = vmax.f32 %v267, 0.0
    %v312 = vmax.f32 %v270, 0.0
    %v313 = vmax.f32 %v275, 0.0
    %v314 = vmax.f32 %v278, 0.0
    %v315 = vmax.f32 %v283, 0.0
    %v316 = vmax.f32 %v286, 0.0
    %v317 = vmax.f32 %v291, 0.0
    %v318 = vmax.f32 %v294, 0.0
    %v319 = vmax.f32 %v299, 0.0
    %v320 = vmax.f32 %v302, 0.0
    %v321 = vld [vmem:[#allocation7] sm:$0xff]
    %v322 = vld [vmem:[#allocation7 + $0x8] sm:$0xff]
    %v323 = vmul.f32 %v305, %v321
    %v324 = vmul.f32 %v306, %v322
    %v325 = vmul.f32 %v307, %v321
    %v326 = vmul.f32 %v308, %v322
    %v327 = vmul.f32 %v309, %v321
    %v328 = vmul.f32 %v310, %v322
    %v329 = vmul.f32 %v311, %v321
    %v330 = vmul.f32 %v312, %v322
    %v331 = vmul.f32 %v313, %v321
    %v332 = vmul.f32 %v314, %v322
    %v333 = vmul.f32 %v315, %v321
    %v334 = vmul.f32 %v316, %v322
    %v335 = vmul.f32 %v317, %v321
    %v336 = vmul.f32 %v318, %v322
    %v337 = vmul.f32 %v319, %v321
    %v338 = vmul.f32 %v320, %v322
    %v339 = vmax.f32 %v323, %v324
    %v340 = vrot.slane %v339, 4
    %v341 = vmax.f32 %v339, %v340
    %v342 = vrot.slane %v341, 2
    %v343 = vmax.f32 %v341, %v342
    %v344 = vrot.slane %v343, 1
    %v345 = vmax.f32 %v343, %v344
    %v346 = vmax.f32 %v325, %v326
    %v347 = vrot.slane %v346, 4
    %v348 = vmax.f32 %v346, %v347
    %v349 = vrot.slane %v348, 2
    %v350 = vmax.f32 %v348, %v349
    %v351 = vrot.slane %v350, 1
    %v352 = vmax.f32 %v350, %v351
    %v353 = vmax.f32 %v327, %v328
    %v354 = vrot.slane %v353, 4
    %v355 = vmax.f32 %v353, %v354
    %v356 = vrot.slane %v355, 2
    %v357 = vmax.f32 %v355, %v356
    %v358 = vrot.slane %v357, 1
    %v359 = vmax.f32 %v357, %v358
    %v360 = vmax.f32 %v329, %v330
    %v361 = vrot.slane %v360, 4
    %v362 = vmax.f32 %v360, %v361
    %v363 = vrot.slane %v362, 2
    %v364 = vmax.f32 %v362, %v363
    %v365 = vrot.slane %v364, 1
    %v366 = vmax.f32 %v364, %v365
    %v367 = vmax.f32 %v331, %v332
    %v368 = vrot.slane %v367, 4
    %v369 = vmax.f32 %v367, %v368
    %v370 = vrot.slane %v369, 2
    %v371 = vmax.f32 %v369, %v370
    %v372 = vrot.slane %v371, 1
    %v373 = vmax.f32 %v371, %v372
    %v374 = vmax.f32 %v333, %v334
    %v375 = vrot.slane %v374, 4
    %v376 = vmax.f32 %v374, %v375
    %v377 = vrot.slane %v376, 2
    %v378 = vmax.f32 %v376, %v377
    %v379 = vrot.slane %v378, 1
    %v380 = vmax.f32 %v378, %v379
    %v381 = vmax.f32 %v335, %v336
    %v382 = vrot.slane %v381, 4
    %v383 = vmax.f32 %v381, %v382
    %v384 = vrot.slane %v383, 2
    %v385 = vmax.f32 %v383, %v384
    %v386 = vrot.slane %v385, 1
    %v387 = vmax.f32 %v385, %v386
    %v388 = vmax.f32 %v337, %v338
    %v389 = vrot.slane %v388, 4
    %v390 = vmax.f32 %v388, %v389
    %v391 = vrot.slane %v390, 2
    %v392 = vmax.f32 %v390, %v391
    %v393 = vrot.slane %v392, 1
    %v394 = vmax.f32 %v392, %v393
    %v395 = vpack.c.bf16 %v345, %v345
    %v396 = vpack.c.bf16 %v352, %v352
    %v397 = vpack.c.bf16 %v359, %v359
    %v398 = vpack.c.bf16 %v366, %v366
    %v399 = vpack.c.bf16 %v373, %v373
    %v400 = vpack.c.bf16 %v380, %v380
    %v401 = vpack.c.bf16 %v387, %v387
    %v402 = vpack.c.bf16 %v394, %v394
    %v403 = vld [vmem:[#allocation8] sm:$0xf]
    %v404 = vld [vmem:[#allocation8 + $0x4] sm:$0xf]
    %v405 = vld [vmem:[#allocation8 + $0x8] sm:$0xf]
    %v406 = vld [vmem:[#allocation8 + $0xc] sm:$0xf]
    %v407 = vld [vmem:[#allocation8 + $0x10] sm:$0xf]
    %v408 = vld [vmem:[#allocation8 + $0x14] sm:$0xf]
    %v409 = vld [vmem:[#allocation8 + $0x18] sm:$0xf]
    %v410 = vld [vmem:[#allocation8 + $0x1c] sm:$0xf]
    %v411 = vld [vmem:[#allocation8 + $0x20] sm:$0xf]
    %v412 = vld [vmem:[#allocation8 + $0x24] sm:$0xf]
    %v413 = vld [vmem:[#allocation8 + $0x28] sm:$0xf]
    %v414 = vld [vmem:[#allocation8 + $0x2c] sm:$0xf]
    %v415 = vld [vmem:[#allocation8 + $0x30] sm:$0xf]
    %v416 = vld [vmem:[#allocation8 + $0x34] sm:$0xf]
    %v417 = vld [vmem:[#allocation8 + $0x38] sm:$0xf]
    %v418 = vld [vmem:[#allocation8 + $0x3c] sm:$0xf]
    %v419 = vld [vmem:[%s4] sm:$0x1]
    %v421 = vlaneseq
    %v422 = vshrl.u32 %v421, 7
    %v423 = vsub.s32 0, %v422
    %v424 = vrot.slane %v419, %v423
    %v434 = vunpack.c.l.b16 %v395
    %v435 = vunpack.c.l.b16 %v396
    %v436 = vunpack.c.l.b16 %v397
    %v437 = vunpack.c.l.b16 %v398
    %v438 = vunpack.c.l.b16 %v399
    %v439 = vunpack.c.l.b16 %v400
    %v440 = vunpack.c.l.b16 %v401
    %v441 = vunpack.c.l.b16 %v402
    %vm442 = vcmask 1041409
    %v443 = vsel %vm442, %v435, %v434
    %vm444 = vcmask 1042434
    %v445 = vsel %vm444, %v436, %v443
    %vm446 = vcmask 1043459
    %v447 = vsel %vm446, %v437, %v445
    %vm448 = vcmask 1044484
    %v449 = vsel %vm448, %v438, %v447
    %vm450 = vcmask 1045509
    %v451 = vsel %vm450, %v439, %v449
    %vm452 = vcmask 1046534
    %v453 = vsel %vm452, %v440, %v451
    %vm454 = vcmask 1047559
    %v455 = vsel %vm454, %v441, %v453
    %v456 = vpack.c.b16 %v455, %v455
    %v474 = vunpack.c.l.b16 %v403
    %v475 = vunpack.c.l.b16 %v404
    %v476 = vunpack.c.l.b16 %v405
    %v477 = vunpack.c.l.b16 %v406
    %v478 = vunpack.c.l.b16 %v407
    %v479 = vunpack.c.l.b16 %v408
    %v480 = vunpack.c.l.b16 %v409
    %v481 = vunpack.c.l.b16 %v410
    %v482 = vunpack.c.l.b16 %v411
    %v483 = vunpack.c.l.b16 %v412
    %v484 = vunpack.c.l.b16 %v413
    %v485 = vunpack.c.l.b16 %v414
    %v486 = vunpack.c.l.b16 %v415
    %v487 = vunpack.c.l.b16 %v416
    %v488 = vunpack.c.l.b16 %v417
    %v489 = vunpack.c.l.b16 %v418
    %v490 = vpack.c.b16 %v475, %v474
    %v491 = vpack.c.b16 %v477, %v476
    %v492 = vpack.c.b16 %v479, %v478
    %v493 = vpack.c.b16 %v481, %v480
    %v494 = vpack.c.b16 %v483, %v482
    %v495 = vpack.c.b16 %v485, %v484
    %v496 = vpack.c.b16 %v487, %v486
    %v497 = vpack.c.b16 %v489, %v488
    %506 = vmatprep.subr.bf16.mxu0 0
    %507 = vmatpush1.bf16.msra.mxu0 %v490
    %508 = vmatprep.subr.bf16.mxu0 0
    %509 = vmatpush1.bf16.msra.mxu0 %v491
    %510 = vmatprep.subr.bf16.mxu0 0
    %511 = vmatpush1.bf16.msra.mxu0 %v492
    %512 = vmatprep.subr.bf16.mxu0 0
    %513 = vmatpush1.bf16.msra.mxu0 %v493
    %514 = vmatprep.subr.bf16.mxu0 0
    %515 = vmatpush1.bf16.msra.mxu0 %v494
    %516 = vmatprep.subr.bf16.mxu0 0
    %517 = vmatpush1.bf16.msra.mxu0 %v495
    %518 = vmatprep.subr.bf16.mxu0 0
    %519 = vmatpush1.bf16.msra.mxu0 %v496
    %520 = vmatprep.subr.bf16.mxu0 0
    %521 = vmatpush1.bf16.msra.mxu0 %v497
    %522 = vmatprep.subr.bf16.mxu0 0
    %523 = vmatpush1.bf16.msra.mxu0 0
    %524 = vmatprep.subr.bf16.mxu0 0
    %525 = vmatpush1.bf16.msra.mxu0 0
    %526 = vmatprep.subr.bf16.mxu0 0
    %527 = vmatpush1.bf16.msra.mxu0 0
    %528 = vmatprep.subr.bf16.mxu0 0
    %529 = vmatpush1.bf16.msra.mxu0 0
    %530 = vmatprep.subr.bf16.mxu0 0
    %531 = vmatpush1.bf16.msra.mxu0 0
    %532 = vmatprep.subr.bf16.mxu0 0
    %533 = vmatpush1.bf16.msra.mxu0 0
    %534 = vmatprep.subr.bf16.mxu0 0
    %535 = vmatpush1.bf16.msra.mxu0 0
    %536 = vmatprep.subr.bf16.mxu0 0
    %537 = vmatpush1.bf16.msra.mxu0 0
    %538 = vmatprep.mubr.bf16.mxu0 0
    %539 = vmatmul.mubr.bf16.gmra.mrb[0].mxu0 %v456
    %v540 = vpop.f32.mrb[0].mxu0
    %v541 = vadd.f32 %v424, %v540
    %v542 = vpop.f32.mrb[0].mxu0
    %v543 = vpop.f32.mrb[0].mxu0
    %v544 = vpop.f32.mrb[0].mxu0
    %545 = vdwg.mxu0
    %v546 = vld [vmem:[%s5] sm:$0xff]
    %v547 = vmul.f32 %v541, %v546
    %548 = vst [vmem:[#allocation10] sm:$0xff] %v547
    // Predicated region
    $region42: #{tpu_custom_call.1} parent=1 // pred_check
      _
    $region43: #{tpu_custom_call.1} parent=1 // pred_check_branch
      %550 = sbr.rel (0) target = $region45
    $region44: #{tpu_custom_call.1} parent=1 // pred_region
      %s552 = ssub.s32 128, 128
      %553 = vsyncadd [#allocation4], %s552
      %s555 = sshll.u32 [#allocation10], 4
      %s556 = int_to_ptr.vmem [resolvable:$true] %s555
      %558 = dma.vmem_to_hbm [thread:$0]  %s556, 128, %s6, [#allocation4]
    $region45: #{tpu_custom_call.1} parent=1 // pred_fallthru
      _
    // Predicated region
    $region46: #{tpu_custom_call.1} parent=1 // pred_check
      _
    $region47: #{tpu_custom_call.1} parent=1 // pred_check_branch
      %560 = sbr.rel (0) target = $region49
    $region48: #{tpu_custom_call.1} parent=1 // pred_region
      %561 = dma.done [#allocation4], 128
    $region49: #{tpu_custom_call.1} parent=1 // pred_fallthru
      _
    %562 = vsyncpa [#allocation3], 1
    %563 = vsyncpa [#allocation6], 1
    %564 = vsyncpa [#allocation9], 1
    %565 = vsyncpa [#allocation4], 1

</llo_original>
